<compile_context>
chip_gen: v6e
topology: v6e:2x2x1
jax: 0.10.0
libtpu: 0.0.40
codegen_flags: <defaults>
</compile_context>

<pallas_src>
import functools

import jax
import jax.numpy as jnp
from jax import lax
from jax.experimental import pallas as pl
from jax.experimental.pallas import tpu as pltpu


def _blaze_kernel(x_ref, wdw_ref, bdw_ref, wpw_ref, bpw_ref, alpha_ref, out_ref,
                  *, ksize, pad, th, w, cin, cout, h_total, n_htiles):
    """One (batch, H-tile) step: depthwise KxK + pointwise 1x1 + residual + PReLU."""
    h = pl.program_id(1)
    base = h * th                                   # first output row of this tile
    if th % 8 == 0:
        base = pl.multiple_of(base, 8)
    cw_in = cin * w

    # ---- H-halo band with in-kernel zero padding (no wrapper jnp.pad, no res input).
    #      band row r corresponds to padded input row (base - pad + r); out-of-image
    #      halo rows are zeroed via select (loads are clamped in-bounds).
    interior = x_ref[pl.ds(base, th), :].astype(jnp.float32)                # (th, cin*w)
    top = x_ref[pl.ds(jnp.maximum(base - pad, 0), pad), :].astype(jnp.float32)
    bot = x_ref[pl.ds(jnp.minimum(base + th, h_total - pad), pad), :].astype(jnp.float32)
    top = jnp.where(h > 0, top, 0.0)
    bot = jnp.where(h < n_htiles - 1, bot, 0.0)
    band = jnp.concatenate([top, interior, bot], axis=0)                    # (th+2p, cin*w)

    # ---- Depthwise KxK conv: the W-shift of tap kj is a fused-lane shift by
    #      (kj - pad); out-of-image W columns are killed by the mask the wrapper
    #      folded into wdw_ref.  K lane shifts + K*K full-width VPU FMAs.
    def lane_shift(v, d):                            # out[:, l] = v[:, (l + d) % L]
        if d == 0:
            return v
        return jnp.concatenate([v[:, d:], v[:, :d]], axis=-1)

    shifted = [lane_shift(band, kj - pad) for kj in range(ksize)]

    wdw = wdw_ref[...]                               # (K*K, cin*w), mask-folded weights
    # acc starts from tap (0,0) + depthwise bias (saves a zero-fill pass).
    acc = shifted[0][0:th, :] * wdw[0:1, :] + bdw_ref[...]
    for ki in range(ksize):
        for kj in range(ksize):
            if ki == 0 and kj == 0:
                continue
            t = ki * ksize + kj
            acc = acc + shifted[kj][ki:ki + th, :] * wdw[t:t + 1, :]

    # ---- Pointwise 1x1 conv + channel-zero-padded residual, entirely on the VPU in
    #      the fused (th, cout*w) output layout.  The residual is the interior rows
    #      already in registers, lane-extended with zeros for the padded channels.
    # TODO(synk): for large Cin/Cout (real BlazeFace 24..96) switch this stage to an
    # MXU matmul with Cin/Cout padded to the native tile instead of Cin VPU FMAs.
    cpad = cout - cin
    if cpad > 0:
        res_full = jnp.concatenate(
            [interior, jnp.zeros((th, cpad * w), jnp.float32)], axis=-1)
    else:
        res_full = interior
    wpw = wpw_ref[...]                               # (cin, cout*w)
    y = res_full + bpw_ref[...]
    for ci in range(cin):
        plane = acc[:, ci * w:(ci + 1) * w]                      # (th, w)
        spread = jnp.concatenate([plane] * cout, axis=-1)        # (th, cout*w)
        y = y + spread * wpw[ci:ci + 1, :]

    # ---- PReLU (per output channel) and a single lane-dense store.
    y = jnp.where(y >= 0.0, y, alpha_ref[...] * y)
    out_ref[...] = y.astype(out_ref.dtype)


def blaze_block(x_nchw, w_dw, b_dw, w_pw, b_pw, alpha, *, kernel_size=5, stride=1,
                tile_h=8):
    """Pallas implementation of BlazeBlock.forward for stride=1 (module default)."""
    if stride != 1:
        # TODO(synk): stride=2 path ((1,2,1,2) asymmetric pad + 2x2 maxpool residual
        # + strided depthwise conv) not implemented in this kernel.
        raise NotImplementedError("only stride=1 is implemented")

    B, Cin, H, W = x_nchw.shape
    Cout = w_pw.shape[0]
    K = kernel_size
    pad = (K - 1) // 2
    assert Cout >= Cin, "channel_pad must be >= 0"

    # Row-tile the grid: several pipeline steps per batch element, bounded per-step
    # VMEM (matters for v7x's 64 MiB VMEM / 2 TensorCores; free on v5e/v6e).
    TH = tile_h if (H % tile_h == 0 and H > tile_h) else H
    assert H % TH == 0 and TH >= pad
    nH = H // TH

    out_dtype = x_nchw.dtype                         # storage dtype preserved (bf16-friendly)
    f32 = jnp.float32

    # Channel-major W-fused activation layout: lane = c*W + w.
    x2d = jnp.transpose(x_nchw, (0, 2, 1, 3)).reshape(B, H, Cin * W)

    # Depthwise weights as per-tap per-lane vectors with the W-boundary mask folded in:
    # wdw_vec[ki*K+kj, ci*W+w] = w_dw[ci,0,ki,kj] * (0 <= w + kj - pad < W).
    wk = w_dw.reshape(Cin, K, K).astype(f32)
    col = jnp.arange(K)[:, None] + jnp.arange(W)[None, :] - pad          # (K, W)
    mask = ((col >= 0) & (col < W)).astype(f32)
    wdw_vec = jnp.transpose(wk, (1, 2, 0))[:, :, :, None] * mask[None, :, None, :]
    wdw_vec = wdw_vec.reshape(K * K, Cin * W)
    bdw_vec = jnp.repeat(b_dw.astype(f32), W)[None, :]                   # (1, Cin*W)

    # Pointwise weights / bias / PReLU slope broadcast onto the fused output lanes.
    wp = w_pw.reshape(Cout, Cin).astype(f32)
    wpw_vec = jnp.repeat(jnp.transpose(wp), W, axis=1)                   # (Cin, Cout*W)
    bpw_vec = jnp.repeat(b_pw.astype(f32), W)[None, :]                   # (1, Cout*W)
    alpha_vec = jnp.repeat(alpha.astype(f32), W)[None, :]                # (1, Cout*W)

    kernel = functools.partial(
        _blaze_kernel, ksize=K, pad=pad, th=TH, w=W,
        cin=Cin, cout=Cout, h_total=H, n_htiles=nH)

    out2d = pl.pallas_call(
        kernel,
        out_shape=jax.ShapeDtypeStruct((B, H, Cout * W), out_dtype),
        grid_spec=pltpu.PrefetchScalarGridSpec(
            num_scalar_prefetch=0,
            grid=(B, nH),
            in_specs=[
                # Full-H input block, resident across the H-tile axis (fetched once
                # per batch element); the kernel slices its halo rows itself.
                pl.BlockSpec((None, H, Cin * W), lambda b, h: (b, 0, 0)),
                pl.BlockSpec((K * K, Cin * W), lambda b, h: (0, 0)),
                pl.BlockSpec((1, Cin * W), lambda b, h: (0, 0)),
                pl.BlockSpec((Cin, Cout * W), lambda b, h: (0, 0)),
                pl.BlockSpec((1, Cout * W), lambda b, h: (0, 0)),
                pl.BlockSpec((1, Cout * W), lambda b, h: (0, 0)),
            ],
            out_specs=pl.BlockSpec((None, TH, Cout * W), lambda b, h: (b, h, 0)),
        ),
        compiler_params=pltpu.CompilerParams(
            dimension_semantics=("parallel", "parallel")),
    )(x2d, wdw_vec, bdw_vec, wpw_vec, bpw_vec, alpha_vec)

    # Free metadata reshape + NCHW transpose outside the kernel.
    return out2d.reshape(B, H, Cout, W).transpose(0, 2, 1, 3)


def blaze_block_ref(x, w_dw, b_dw, w_pw, b_pw, alpha, *, kernel_size=5):
    """Pure-JAX reference matching the PyTorch forward (stride=1)."""
    B, Cin, H, W = x.shape
    Cout = w_pw.shape[0]
    pad = (kernel_size - 1) // 2
    dn = ('NCHW', 'OIHW', 'NCHW')
    h = lax.conv_general_dilated(x, w_dw, (1, 1), [(pad, pad), (pad, pad)],
                                 dimension_numbers=dn, feature_group_count=Cin)
    h = h + b_dw[None, :, None, None]
    h = lax.conv_general_dilated(h, w_pw, (1, 1), 'VALID', dimension_numbers=dn)
    h = h + b_pw[None, :, None, None]
    xp = jnp.pad(x, ((0, 0), (0, Cout - Cin), (0, 0), (0, 0)))
    y = h + xp
    a = alpha[None, :, None, None]
    return jnp.where(y >= 0, y, a * y)


if __name__ == "__main__":
    key = jax.random.PRNGKey(0)
    kx, k1, k2, k3, k4 = jax.random.split(key, 5)

    B, Cin, Cout, H, W, K = 2, 4, 8, 16, 16, 5
    x = jax.random.normal(kx, (B, Cin, H, W), jnp.float32)

    # Deterministic synthetic parameters, torch-shaped:
    w_dw = jax.random.normal(k1, (Cin, 1, K, K), jnp.float32) * 0.2     # depthwise conv
    b_dw = jax.random.normal(k2, (Cin,), jnp.float32) * 0.1
    w_pw = jax.random.normal(k3, (Cout, Cin, 1, 1), jnp.float32) * 0.3  # 1x1 conv
    b_pw = jax.random.normal(k4, (Cout,), jnp.float32) * 0.1
    alpha = jnp.full((Cout,), 0.25, jnp.float32)                        # PReLU default init

    out = blaze_block(x, w_dw, b_dw, w_pw, b_pw, alpha, kernel_size=K, stride=1)
    out = jax.block_until_ready(out)

    ref = blaze_block_ref(x, w_dw, b_dw, w_pw, b_pw, alpha, kernel_size=K)
    assert out.shape == (B, Cout, H, W)
    err = float(jnp.max(jnp.abs(out - ref)))
    assert err < 1e-4, f"max abs err {err}"

    print("KERNEL_OK")
</pallas_src>

<mosaic_0001>
module attributes {stable_mosaic.version = 11 : i64} {
  func.func @_blaze_kernel(%arg0: i32, %arg1: i32, %arg2: memref<1x16x64xf32, #tpu.memory_space<vmem>>, %arg3: memref<25x64xf32, #tpu.memory_space<vmem>>, %arg4: memref<1x64xf32, #tpu.memory_space<vmem>>, %arg5: memref<4x128xf32, #tpu.memory_space<vmem>>, %arg6: memref<1x128xf32, #tpu.memory_space<vmem>>, %arg7: memref<1x128xf32, #tpu.memory_space<vmem>>, %arg8: memref<1x8x128xf32, #tpu.memory_space<vmem>>) attributes {dimension_semantics = [#tpu.dimension_semantics<parallel>, #tpu.dimension_semantics<parallel>], iteration_bounds = array<i64: 2, 2>, scalar_prefetch = 0 : i64, scratch_operands = 0 : i64, tpu.core_type = #tpu.core_type<tc>, window_params = [{transform_indices = @transform_0, window_bounds = array<i64: 1, 16, 64>}, {pipeline_mode = #tpu.pipeline_mode<synchronous>, transform_indices = @transform_1, window_bounds = array<i64: 25, 64>}, {pipeline_mode = #tpu.pipeline_mode<synchronous>, transform_indices = @transform_2, window_bounds = array<i64: 1, 64>}, {pipeline_mode = #tpu.pipeline_mode<synchronous>, transform_indices = @transform_3, window_bounds = array<i64: 4, 128>}, {pipeline_mode = #tpu.pipeline_mode<synchronous>, transform_indices = @transform_4, window_bounds = array<i64: 1, 128>}, {pipeline_mode = #tpu.pipeline_mode<synchronous>, transform_indices = @transform_5, window_bounds = array<i64: 1, 128>}, {transform_indices = @transform_6, window_bounds = array<i64: 1, 8, 128>}]} {
    %c8_i32 = arith.constant 8 : i32
    %0 = arith.muli %arg1, %c8_i32 : i32
    %1 = tpu.assume_multiple %0, 8 : i32
    %c0 = arith.constant 0 : index
    %2 = arith.index_cast %1 : i32 to index
    %c0_0 = arith.constant 0 : index
    %3 = vector.load %arg2[%c0, %2, %c0_0] : memref<1x16x64xf32, #tpu.memory_space<vmem>>, vector<1x8x64xf32>
    %4 = vector.shape_cast %3 : vector<1x8x64xf32> to vector<8x64xf32>
    %c2_i32 = arith.constant 2 : i32
    %5 = arith.subi %1, %c2_i32 : i32
    %c0_i32 = arith.constant 0 : i32
    %6 = arith.maxsi %5, %c0_i32 : i32
    %c0_1 = arith.constant 0 : index
    %7 = arith.index_cast %6 : i32 to index
    %c0_2 = arith.constant 0 : index
    %8 = vector.load %arg2[%c0_1, %7, %c0_2] : memref<1x16x64xf32, #tpu.memory_space<vmem>>, vector<1x2x64xf32>
    %9 = vector.shape_cast %8 : vector<1x2x64xf32> to vector<2x64xf32>
    %c8_i32_3 = arith.constant 8 : i32
    %10 = arith.addi %1, %c8_i32_3 : i32
    %c14_i32 = arith.constant 14 : i32
    %11 = arith.minsi %10, %c14_i32 : i32
    %c0_4 = arith.constant 0 : index
    %12 = arith.index_cast %11 : i32 to index
    %c0_5 = arith.constant 0 : index
    %13 = vector.load %arg2[%c0_4, %12, %c0_5] : memref<1x16x64xf32, #tpu.memory_space<vmem>>, vector<1x2x64xf32>
    %14 = vector.shape_cast %13 : vector<1x2x64xf32> to vector<2x64xf32>
    %c0_i32_6 = arith.constant 0 : i32
    %15 = arith.cmpi sgt, %arg1, %c0_i32_6 : i32
    %cst = arith.constant 0.000000e+00 : f32
    %16 = vector.broadcast %cst : f32 to vector<2x64xf32>
    %17 = arith.select %15, %9, %16 : vector<2x64xf32>
    %c1_i32 = arith.constant 1 : i32
    %18 = arith.cmpi slt, %arg1, %c1_i32 : i32
    %cst_7 = arith.constant 0.000000e+00 : f32
    %19 = vector.broadcast %cst_7 : f32 to vector<2x64xf32>
    %20 = arith.select %18, %14, %19 : vector<2x64xf32>
    %21 = tpu.concatenate %17, %4, %20 in 0 : vector<2x64xf32>, vector<8x64xf32>, vector<2x64xf32> -> vector<12x64xf32>
    %22 = vector.extract_strided_slice %21 {offsets = [0, 62], sizes = [12, 2], strides = [1, 1]} : vector<12x64xf32> to vector<12x2xf32>
    %23 = vector.extract_strided_slice %21 {offsets = [0, 0], sizes = [12, 62], strides = [1, 1]} : vector<12x64xf32> to vector<12x62xf32>
    %24 = tpu.concatenate %22, %23 in 1 : vector<12x2xf32>, vector<12x62xf32> -> vector<12x64xf32>
    %25 = vector.extract_strided_slice %21 {offsets = [0, 63], sizes = [12, 1], strides = [1, 1]} : vector<12x64xf32> to vector<12x1xf32>
    %26 = vector.extract_strided_slice %21 {offsets = [0, 0], sizes = [12, 63], strides = [1, 1]} : vector<12x64xf32> to vector<12x63xf32>
    %27 = tpu.concatenate %25, %26 in 1 : vector<12x1xf32>, vector<12x63xf32> -> vector<12x64xf32>
    %28 = vector.extract_strided_slice %21 {offsets = [0, 1], sizes = [12, 63], strides = [1, 1]} : vector<12x64xf32> to vector<12x63xf32>
    %29 = vector.extract_strided_slice %21 {offsets = [0, 0], sizes = [12, 1], strides = [1, 1]} : vector<12x64xf32> to vector<12x1xf32>
    %30 = tpu.concatenate %28, %29 in 1 : vector<12x63xf32>, vector<12x1xf32> -> vector<12x64xf32>
    %31 = vector.extract_strided_slice %21 {offsets = [0, 2], sizes = [12, 62], strides = [1, 1]} : vector<12x64xf32> to vector<12x62xf32>
    %32 = vector.extract_strided_slice %21 {offsets = [0, 0], sizes = [12, 2], strides = [1, 1]} : vector<12x64xf32> to vector<12x2xf32>
    %33 = tpu.concatenate %31, %32 in 1 : vector<12x62xf32>, vector<12x2xf32> -> vector<12x64xf32>
    %c0_8 = arith.constant 0 : index
    %c0_9 = arith.constant 0 : index
    %34 = vector.load %arg3[%c0_8, %c0_9] : memref<25x64xf32, #tpu.memory_space<vmem>>, vector<25x64xf32>
    %35 = vector.extract_strided_slice %24 {offsets = [0, 0], sizes = [8, 64], strides = [1, 1]} : vector<12x64xf32> to vector<8x64xf32>
    %36 = vector.extract_strided_slice %34 {offsets = [0, 0], sizes = [1, 64], strides = [1, 1]} : vector<25x64xf32> to vector<1x64xf32>
    %37 = vector.broadcast %36 : vector<1x64xf32> to vector<8x64xf32>
    %38 = arith.mulf %35, %37 : vector<8x64xf32>
    %c0_10 = arith.constant 0 : index
    %c0_11 = arith.constant 0 : index
    %39 = vector.load %arg4[%c0_10, %c0_11] : memref<1x64xf32, #tpu.memory_space<vmem>>, vector<1x64xf32>
    %40 = vector.broadcast %39 : vector<1x64xf32> to vector<8x64xf32>
    %41 = arith.addf %38, %40 : vector<8x64xf32>
    %42 = vector.extract_strided_slice %27 {offsets = [0, 0], sizes = [8, 64], strides = [1, 1]} : vector<12x64xf32> to vector<8x64xf32>
    %43 = vector.extract_strided_slice %34 {offsets = [1, 0], sizes = [1, 64], strides = [1, 1]} : vector<25x64xf32> to vector<1x64xf32>
    %44 = vector.broadcast %43 : vector<1x64xf32> to vector<8x64xf32>
    %45 = arith.mulf %42, %44 : vector<8x64xf32>
    %46 = arith.addf %41, %45 : vector<8x64xf32>
    %47 = vector.extract_strided_slice %21 {offsets = [0, 0], sizes = [8, 64], strides = [1, 1]} : vector<12x64xf32> to vector<8x64xf32>
    %48 = vector.extract_strided_slice %34 {offsets = [2, 0], sizes = [1, 64], strides = [1, 1]} : vector<25x64xf32> to vector<1x64xf32>
    %49 = vector.broadcast %48 : vector<1x64xf32> to vector<8x64xf32>
    %50 = arith.mulf %47, %49 : vector<8x64xf32>
    %51 = arith.addf %46, %50 : vector<8x64xf32>
    %52 = vector.extract_strided_slice %30 {offsets = [0, 0], sizes = [8, 64], strides = [1, 1]} : vector<12x64xf32> to vector<8x64xf32>
    %53 = vector.extract_strided_slice %34 {offsets = [3, 0], sizes = [1, 64], strides = [1, 1]} : vector<25x64xf32> to vector<1x64xf32>
    %54 = vector.broadcast %53 : vector<1x64xf32> to vector<8x64xf32>
    %55 = arith.mulf %52, %54 : vector<8x64xf32>
    %56 = arith.addf %51, %55 : vector<8x64xf32>
    %57 = vector.extract_strided_slice %33 {offsets = [0, 0], sizes = [8, 64], strides = [1, 1]} : vector<12x64xf32> to vector<8x64xf32>
    %58 = vector.extract_strided_slice %34 {offsets = [4, 0], sizes = [1, 64], strides = [1, 1]} : vector<25x64xf32> to vector<1x64xf32>
    %59 = vector.broadcast %58 : vector<1x64xf32> to vector<8x64xf32>
    %60 = arith.mulf %57, %59 : vector<8x64xf32>
    %61 = arith.addf %56, %60 : vector<8x64xf32>
    %62 = vector.extract_strided_slice %24 {offsets = [1, 0], sizes = [8, 64], strides = [1, 1]} : vector<12x64xf32> to vector<8x64xf32>
    %63 = vector.extract_strided_slice %34 {offsets = [5, 0], sizes = [1, 64], strides = [1, 1]} : vector<25x64xf32> to vector<1x64xf32>
    %64 = vector.broadcast %63 : vector<1x64xf32> to vector<8x64xf32>
    %65 = arith.mulf %62, %64 : vector<8x64xf32>
    %66 = arith.addf %61, %65 : vector<8x64xf32>
    %67 = vector.extract_strided_slice %27 {offsets = [1, 0], sizes = [8, 64], strides = [1, 1]} : vector<12x64xf32> to vector<8x64xf32>
    %68 = vector.extract_strided_slice %34 {offsets = [6, 0], sizes = [1, 64], strides = [1, 1]} : vector<25x64xf32> to vector<1x64xf32>
    %69 = vector.broadcast %68 : vector<1x64xf32> to vector<8x64xf32>
    %70 = arith.mulf %67, %69 : vector<8x64xf32>
    %71 = arith.addf %66, %70 : vector<8x64xf32>
    %72 = vector.extract_strided_slice %21 {offsets = [1, 0], sizes = [8, 64], strides = [1, 1]} : vector<12x64xf32> to vector<8x64xf32>
    %73 = vector.extract_strided_slice %34 {offsets = [7, 0], sizes = [1, 64], strides = [1, 1]} : vector<25x64xf32> to vector<1x64xf32>
    %74 = vector.broadcast %73 : vector<1x64xf32> to vector<8x64xf32>
    %75 = arith.mulf %72, %74 : vector<8x64xf32>
    %76 = arith.addf %71, %75 : vector<8x64xf32>
    %77 = vector.extract_strided_slice %30 {offsets = [1, 0], sizes = [8, 64], strides = [1, 1]} : vector<12x64xf32> to vector<8x64xf32>
    %78 = vector.extract_strided_slice %34 {offsets = [8, 0], sizes = [1, 64], strides = [1, 1]} : vector<25x64xf32> to vector<1x64xf32>
    %79 = vector.broadcast %78 : vector<1x64xf32> to vector<8x64xf32>
    %80 = arith.mulf %77, %79 : vector<8x64xf32>
    %81 = arith.addf %76, %80 : vector<8x64xf32>
    %82 = vector.extract_strided_slice %33 {offsets = [1, 0], sizes = [8, 64], strides = [1, 1]} : vector<12x64xf32> to vector<8x64xf32>
    %83 = vector.extract_strided_slice %34 {offsets = [9, 0], sizes = [1, 64], strides = [1, 1]} : vector<25x64xf32> to vector<1x64xf32>
    %84 = vector.broadcast %83 : vector<1x64xf32> to vector<8x64xf32>
    %85 = arith.mulf %82, %84 : vector<8x64xf32>
    %86 = arith.addf %81, %85 : vector<8x64xf32>
    %87 = vector.extract_strided_slice %24 {offsets = [2, 0], sizes = [8, 64], strides = [1, 1]} : vector<12x64xf32> to vector<8x64xf32>
    %88 = vector.extract_strided_slice %34 {offsets = [10, 0], sizes = [1, 64], strides = [1, 1]} : vector<25x64xf32> to vector<1x64xf32>
    %89 = vector.broadcast %88 : vector<1x64xf32> to vector<8x64xf32>
    %90 = arith.mulf %87, %89 : vector<8x64xf32>
    %91 = arith.addf %86, %90 : vector<8x64xf32>
    %92 = vector.extract_strided_slice %27 {offsets = [2, 0], sizes = [8, 64], strides = [1, 1]} : vector<12x64xf32> to vector<8x64xf32>
    %93 = vector.extract_strided_slice %34 {offsets = [11, 0], sizes = [1, 64], strides = [1, 1]} : vector<25x64xf32> to vector<1x64xf32>
    %94 = vector.broadcast %93 : vector<1x64xf32> to vector<8x64xf32>
    %95 = arith.mulf %92, %94 : vector<8x64xf32>
    %96 = arith.addf %91, %95 : vector<8x64xf32>
    %97 = vector.extract_strided_slice %21 {offsets = [2, 0], sizes = [8, 64], strides = [1, 1]} : vector<12x64xf32> to vector<8x64xf32>
    %98 = vector.extract_strided_slice %34 {offsets = [12, 0], sizes = [1, 64], strides = [1, 1]} : vector<25x64xf32> to vector<1x64xf32>
    %99 = vector.broadcast %98 : vector<1x64xf32> to vector<8x64xf32>
    %100 = arith.mulf %97, %99 : vector<8x64xf32>
    %101 = arith.addf %96, %100 : vector<8x64xf32>
    %102 = vector.extract_strided_slice %30 {offsets = [2, 0], sizes = [8, 64], strides = [1, 1]} : vector<12x64xf32> to vector<8x64xf32>
    %103 = vector.extract_strided_slice %34 {offsets = [13, 0], sizes = [1, 64], strides = [1, 1]} : vector<25x64xf32> to vector<1x64xf32>
    %104 = vector.broadcast %103 : vector<1x64xf32> to vector<8x64xf32>
    %105 = arith.mulf %102, %104 : vector<8x64xf32>
    %106 = arith.addf %101, %105 : vector<8x64xf32>
    %107 = vector.extract_strided_slice %33 {offsets = [2, 0], sizes = [8, 64], strides = [1, 1]} : vector<12x64xf32> to vector<8x64xf32>
    %108 = vector.extract_strided_slice %34 {offsets = [14, 0], sizes = [1, 64], strides = [1, 1]} : vector<25x64xf32> to vector<1x64xf32>
    %109 = vector.broadcast %108 : vector<1x64xf32> to vector<8x64xf32>
    %110 = arith.mulf %107, %109 : vector<8x64xf32>
    %111 = arith.addf %106, %110 : vector<8x64xf32>
    %112 = vector.extract_strided_slice %24 {offsets = [3, 0], sizes = [8, 64], strides = [1, 1]} : vector<12x64xf32> to vector<8x64xf32>
    %113 = vector.extract_strided_slice %34 {offsets = [15, 0], sizes = [1, 64], strides = [1, 1]} : vector<25x64xf32> to vector<1x64xf32>
    %114 = vector.broadcast %113 : vector<1x64xf32> to vector<8x64xf32>
    %115 = arith.mulf %112, %114 : vector<8x64xf32>
    %116 = arith.addf %111, %115 : vector<8x64xf32>
    %117 = vector.extract_strided_slice %27 {offsets = [3, 0], sizes = [8, 64], strides = [1, 1]} : vector<12x64xf32> to vector<8x64xf32>
    %118 = vector.extract_strided_slice %34 {offsets = [16, 0], sizes = [1, 64], strides = [1, 1]} : vector<25x64xf32> to vector<1x64xf32>
    %119 = vector.broadcast %118 : vector<1x64xf32> to vector<8x64xf32>
    %120 = arith.mulf %117, %119 : vector<8x64xf32>
    %121 = arith.addf %116, %120 : vector<8x64xf32>
    %122 = vector.extract_strided_slice %21 {offsets = [3, 0], sizes = [8, 64], strides = [1, 1]} : vector<12x64xf32> to vector<8x64xf32>
    %123 = vector.extract_strided_slice %34 {offsets = [17, 0], sizes = [1, 64], strides = [1, 1]} : vector<25x64xf32> to vector<1x64xf32>
    %124 = vector.broadcast %123 : vector<1x64xf32> to vector<8x64xf32>
    %125 = arith.mulf %122, %124 : vector<8x64xf32>
    %126 = arith.addf %121, %125 : vector<8x64xf32>
    %127 = vector.extract_strided_slice %30 {offsets = [3, 0], sizes = [8, 64], strides = [1, 1]} : vector<12x64xf32> to vector<8x64xf32>
    %128 = vector.extract_strided_slice %34 {offsets = [18, 0], sizes = [1, 64], strides = [1, 1]} : vector<25x64xf32> to vector<1x64xf32>
    %129 = vector.broadcast %128 : vector<1x64xf32> to vector<8x64xf32>
    %130 = arith.mulf %127, %129 : vector<8x64xf32>
    %131 = arith.addf %126, %130 : vector<8x64xf32>
    %132 = vector.extract_strided_slice %33 {offsets = [3, 0], sizes = [8, 64], strides = [1, 1]} : vector<12x64xf32> to vector<8x64xf32>
    %133 = vector.extract_strided_slice %34 {offsets = [19, 0], sizes = [1, 64], strides = [1, 1]} : vector<25x64xf32> to vector<1x64xf32>
    %134 = vector.broadcast %133 : vector<1x64xf32> to vector<8x64xf32>
    %135 = arith.mulf %132, %134 : vector<8x64xf32>
    %136 = arith.addf %131, %135 : vector<8x64xf32>
    %137 = vector.extract_strided_slice %24 {offsets = [4, 0], sizes = [8, 64], strides = [1, 1]} : vector<12x64xf32> to vector<8x64xf32>
    %138 = vector.extract_strided_slice %34 {offsets = [20, 0], sizes = [1, 64], strides = [1, 1]} : vector<25x64xf32> to vector<1x64xf32>
    %139 = vector.broadcast %138 : vector<1x64xf32> to vector<8x64xf32>
    %140 = arith.mulf %137, %139 : vector<8x64xf32>
    %141 = arith.addf %136, %140 : vector<8x64xf32>
    %142 = vector.extract_strided_slice %27 {offsets = [4, 0], sizes = [8, 64], strides = [1, 1]} : vector<12x64xf32> to vector<8x64xf32>
    %143 = vector.extract_strided_slice %34 {offsets = [21, 0], sizes = [1, 64], strides = [1, 1]} : vector<25x64xf32> to vector<1x64xf32>
    %144 = vector.broadcast %143 : vector<1x64xf32> to vector<8x64xf32>
    %145 = arith.mulf %142, %144 : vector<8x64xf32>
    %146 = arith.addf %141, %145 : vector<8x64xf32>
    %147 = vector.extract_strided_slice %21 {offsets = [4, 0], sizes = [8, 64], strides = [1, 1]} : vector<12x64xf32> to vector<8x64xf32>
    %148 = vector.extract_strided_slice %34 {offsets = [22, 0], sizes = [1, 64], strides = [1, 1]} : vector<25x64xf32> to vector<1x64xf32>
    %149 = vector.broadcast %148 : vector<1x64xf32> to vector<8x64xf32>
    %150 = arith.mulf %147, %149 : vector<8x64xf32>
    %151 = arith.addf %146, %150 : vector<8x64xf32>
    %152 = vector.extract_strided_slice %30 {offsets = [4, 0], sizes = [8, 64], strides = [1, 1]} : vector<12x64xf32> to vector<8x64xf32>
    %153 = vector.extract_strided_slice %34 {offsets = [23, 0], sizes = [1, 64], strides = [1, 1]} : vector<25x64xf32> to vector<1x64xf32>
    %154 = vector.broadcast %153 : vector<1x64xf32> to vector<8x64xf32>
    %155 = arith.mulf %152, %154 : vector<8x64xf32>
    %156 = arith.addf %151, %155 : vector<8x64xf32>
    %157 = vector.extract_strided_slice %33 {offsets = [4, 0], sizes = [8, 64], strides = [1, 1]} : vector<12x64xf32> to vector<8x64xf32>
    %158 = vector.extract_strided_slice %34 {offsets = [24, 0], sizes = [1, 64], strides = [1, 1]} : vector<25x64xf32> to vector<1x64xf32>
    %159 = vector.broadcast %158 : vector<1x64xf32> to vector<8x64xf32>
    %160 = arith.mulf %157, %159 : vector<8x64xf32>
    %161 = arith.addf %156, %160 : vector<8x64xf32>
    %cst_12 = arith.constant 0.000000e+00 : f32
    %162 = vector.broadcast %cst_12 : f32 to vector<8x64xf32>
    %163 = tpu.concatenate %4, %162 in 1 : vector<8x64xf32>, vector<8x64xf32> -> vector<8x128xf32>
    %c0_13 = arith.constant 0 : index
    %c0_14 = arith.constant 0 : index
    %164 = vector.load %arg5[%c0_13, %c0_14] : memref<4x128xf32, #tpu.memory_space<vmem>>, vector<4x128xf32>
    %c0_15 = arith.constant 0 : index
    %c0_16 = arith.constant 0 : index
    %165 = vector.load %arg6[%c0_15, %c0_16] : memref<1x128xf32, #tpu.memory_space<vmem>>, vector<1x128xf32>
    %166 = vector.broadcast %165 : vector<1x128xf32> to vector<8x128xf32>
    %167 = arith.addf %163, %166 : vector<8x128xf32>
    %168 = vector.extract_strided_slice %161 {offsets = [0, 0], sizes = [8, 16], strides = [1, 1]} : vector<8x64xf32> to vector<8x16xf32>
    %169 = tpu.concatenate %168, %168, %168, %168, %168, %168, %168, %168 in 1 : vector<8x16xf32>, vector<8x16xf32>, vector<8x16xf32>, vector<8x16xf32>, vector<8x16xf32>, vector<8x16xf32>, vector<8x16xf32>, vector<8x16xf32> -> vector<8x128xf32>
    %170 = vector.extract_strided_slice %164 {offsets = [0, 0], sizes = [1, 128], strides = [1, 1]} : vector<4x128xf32> to vector<1x128xf32>
    %171 = vector.broadcast %170 : vector<1x128xf32> to vector<8x128xf32>
    %172 = arith.mulf %169, %171 : vector<8x128xf32>
    %173 = arith.addf %167, %172 : vector<8x128xf32>
    %174 = vector.extract_strided_slice %161 {offsets = [0, 16], sizes = [8, 16], strides = [1, 1]} : vector<8x64xf32> to vector<8x16xf32>
    %175 = tpu.concatenate %174, %174, %174, %174, %174, %174, %174, %174 in 1 : vector<8x16xf32>, vector<8x16xf32>, vector<8x16xf32>, vector<8x16xf32>, vector<8x16xf32>, vector<8x16xf32>, vector<8x16xf32>, vector<8x16xf32> -> vector<8x128xf32>
    %176 = vector.extract_strided_slice %164 {offsets = [1, 0], sizes = [1, 128], strides = [1, 1]} : vector<4x128xf32> to vector<1x128xf32>
    %177 = vector.broadcast %176 : vector<1x128xf32> to vector<8x128xf32>
    %178 = arith.mulf %175, %177 : vector<8x128xf32>
    %179 = arith.addf %173, %178 : vector<8x128xf32>
    %180 = vector.extract_strided_slice %161 {offsets = [0, 32], sizes = [8, 16], strides = [1, 1]} : vector<8x64xf32> to vector<8x16xf32>
    %181 = tpu.concatenate %180, %180, %180, %180, %180, %180, %180, %180 in 1 : vector<8x16xf32>, vector<8x16xf32>, vector<8x16xf32>, vector<8x16xf32>, vector<8x16xf32>, vector<8x16xf32>, vector<8x16xf32>, vector<8x16xf32> -> vector<8x128xf32>
    %182 = vector.extract_strided_slice %164 {offsets = [2, 0], sizes = [1, 128], strides = [1, 1]} : vector<4x128xf32> to vector<1x128xf32>
    %183 = vector.broadcast %182 : vector<1x128xf32> to vector<8x128xf32>
    %184 = arith.mulf %181, %183 : vector<8x128xf32>
    %185 = arith.addf %179, %184 : vector<8x128xf32>
    %186 = vector.extract_strided_slice %161 {offsets = [0, 48], sizes = [8, 16], strides = [1, 1]} : vector<8x64xf32> to vector<8x16xf32>
    %187 = tpu.concatenate %186, %186, %186, %186, %186, %186, %186, %186 in 1 : vector<8x16xf32>, vector<8x16xf32>, vector<8x16xf32>, vector<8x16xf32>, vector<8x16xf32>, vector<8x16xf32>, vector<8x16xf32>, vector<8x16xf32> -> vector<8x128xf32>
    %188 = vector.extract_strided_slice %164 {offsets = [3, 0], sizes = [1, 128], strides = [1, 1]} : vector<4x128xf32> to vector<1x128xf32>
    %189 = vector.broadcast %188 : vector<1x128xf32> to vector<8x128xf32>
    %190 = arith.mulf %187, %189 : vector<8x128xf32>
    %191 = arith.addf %185, %190 : vector<8x128xf32>
    %cst_17 = arith.constant 0.000000e+00 : f32
    %192 = vector.broadcast %cst_17 : f32 to vector<8x128xf32>
    %193 = arith.cmpf oge, %191, %192 : vector<8x128xf32>
    %c0_18 = arith.constant 0 : index
    %c0_19 = arith.constant 0 : index
    %194 = vector.load %arg7[%c0_18, %c0_19] : memref<1x128xf32, #tpu.memory_space<vmem>>, vector<1x128xf32>
    %195 = vector.broadcast %194 : vector<1x128xf32> to vector<8x128xf32>
    %196 = arith.mulf %195, %191 : vector<8x128xf32>
    %197 = arith.select %193, %191, %196 : vector<8x128xi1>, vector<8x128xf32>
    %c0_20 = arith.constant 0 : index
    %c0_21 = arith.constant 0 : index
    %c0_22 = arith.constant 0 : index
    %198 = vector.load %arg8[%c0_20, %c0_21, %c0_22] : memref<1x8x128xf32, #tpu.memory_space<vmem>>, vector<1x8x128xf32>
    %199 = vector.shape_cast %198 : vector<1x8x128xf32> to vector<8x128xf32>
    %200 = vector.shape_cast %197 : vector<8x128xf32> to vector<1x8x128xf32>
    tpu.vector_store %arg8[%c0_20, %c0_21, %c0_22], %200 {strides = array<i32>} : memref<1x8x128xf32, #tpu.memory_space<vmem>>, vector<1x8x128xf32>,
    return
  }
  func.func @transform_0(%arg0: i32, %arg1: i32) -> (i32, i32, i32) {
    %c0_i32 = arith.constant 0 : i32
    %c0_i32_0 = arith.constant 0 : i32
    %c0_i32_1 = arith.constant 0 : i32
    return %arg0, %c0_i32, %c0_i32_0 : i32, i32, i32
  }
  func.func @transform_1(%arg0: i32, %arg1: i32) -> (i32, i32) {
    %c0_i32 = arith.constant 0 : i32
    %c0_i32_0 = arith.constant 0 : i32
    %c0_i32_1 = arith.constant 0 : i32
    return %c0_i32, %c0_i32_0 : i32, i32
  }
  func.func @transform_2(%arg0: i32, %arg1: i32) -> (i32, i32) {
    %c0_i32 = arith.constant 0 : i32
    %c0_i32_0 = arith.constant 0 : i32
    %c0_i32_1 = arith.constant 0 : i32
    return %c0_i32, %c0_i32_0 : i32, i32
  }
  func.func @transform_3(%arg0: i32, %arg1: i32) -> (i32, i32) {
    %c0_i32 = arith.constant 0 : i32
    %c0_i32_0 = arith.constant 0 : i32
    %c0_i32_1 = arith.constant 0 : i32
    return %c0_i32, %c0_i32_0 : i32, i32
  }
  func.func @transform_4(%arg0: i32, %arg1: i32) -> (i32, i32) {
    %c0_i32 = arith.constant 0 : i32
    %c0_i32_0 = arith.constant 0 : i32
    %c0_i32_1 = arith.constant 0 : i32
    return %c0_i32, %c0_i32_0 : i32, i32
  }
  func.func @transform_5(%arg0: i32, %arg1: i32) -> (i32, i32) {
    %c0_i32 = arith.constant 0 : i32
    %c0_i32_0 = arith.constant 0 : i32
    %c0_i32_1 = arith.constant 0 : i32
    return %c0_i32, %c0_i32_0 : i32, i32
  }
  func.func @transform_6(%arg0: i32, %arg1: i32) -> (i32, i32, i32) {
    %c0_i32 = arith.constant 0 : i32
    %c0_i32_0 = arith.constant 0 : i32
    return %arg0, %arg1, %c0_i32 : i32, i32, i32
  }
}

</mosaic_0001>

<llo_original>
// kernel: tpu_custom_call.1
$region0: #{tpu_custom_call.1}
  #allocation0 [shape = 'u32[]', space=smem, size = 0x4, offset = 0x4, fixed_abs, tag = 'smem constant byte address 0x4 - core index']
  #allocation1 [shape = 'u32[144,128]{1,0:T(1,128)}', space=vmem, size = 0x12000, scoped, tag = 'internal scratch']
  %s0 = inlined_call_operand.hbm [shape: f32[2,16,64], index: 0, kind: input, shape index: {}]
  %s1 = inlined_call_operand.hbm [shape: f32[25,64], index: 1, kind: input, shape index: {}]
  %s2 = inlined_call_operand.vmem [shape: f32[1,64], index: 2, kind: input, shape index: {}]
  %s3 = inlined_call_operand.vmem [shape: f32[4,128], index: 3, kind: input, shape index: {}]
  %s4 = inlined_call_operand.vmem [shape: f32[1,128], index: 4, kind: input, shape index: {}]
  %s5 = inlined_call_operand.vmem [shape: f32[1,128], index: 5, kind: input, shape index: {}]
  %s6 = inlined_call_operand.hbm [shape: f32[2,16,128], index: 6, kind: output, shape index: {}]
  %s7 = sld [smem:[#allocation0]]
  $region65: #{tpu_custom_call.1} parent=0
    _
  %s9 = ssub.s32 1, %s7
  %s10 = scalar_select 0, %s9, %s7
  $region1: #{tpu_custom_call.1} parent=0
    #allocation2 [shape = 'u8[16384]{0}', space=vmem, size = 0x4000, scoped, tag = 'input window, operand 0']
    #allocation3 [shape = 's32[2]{0}', space=sflag, size = 0x8, scoped, tag = 'scoped memory for tpu_custom_call.1']
    #allocation4 [shape = 's32[2]{0}', space=sflag, size = 0x8, scoped, tag = 'scoped memory for tpu_custom_call.1']
    #allocation5 [shape = 'u8[16384]{0}', space=vmem, size = 0x4000, scoped, tag = 'input window, operand 1, single buffered']
    #allocation6 [shape = 's32[1]{0}', space=sflag, size = 0x4, scoped, tag = 'scoped memory for tpu_custom_call.1']
    #allocation7 [shape = 'u8[8192]{0}', space=vmem, size = 0x2000, scoped, tag = 'output window, operand 0']
    %11 = vsyncpa [#allocation3], 0
    %s12 = scalar_lea.sflag [#allocation3], 1
    %13 = vsyncpa %s12, 0
    %14 = vsyncpa [#allocation6], 0
    %15 = vsyncpa [#allocation4], 0
    %s16 = scalar_lea.sflag [#allocation4], 1
    %17 = vsyncpa %s16, 0
    loop: start=0, step=1, limit=6
    $region2: #{tpu_custom_call.1} parent=1 // loop_pre_header
      _
    $region3: #{tpu_custom_call.1} parent=1 // loop_header
      %s19 = sphi 0, %s23
      %p20 = scmp.ge.s32.totalorder %s19, 6
      %s26 = sphi 0, %s38
      %s27 = sphi 0, %s34
      %s28 = sphi 0, %s26
      %s29 = sphi 0, %s27
      %s30 = sphi 0, %s28
      %s31 = sphi 0, %s29
      %s41 = sphi 0, %s43
      %s44 = sphi 0, %s41
      %s45 = sphi 0, %s44
      %s61 = sphi 0, %s45
      %s65 = sphi 0, %s65
      %s67 = sphi 0, %s65
      %s68 = sphi 0, %s67
      %s82 = sphi 0, %s68
      %s86 = sphi 0, %s86
      %s88 = sphi 0, %s86
      %s89 = sphi 0, %s88
      %s103 = sphi 0, %s89
      %s107 = sphi 0, %s107
      %s109 = sphi 0, %s107
      %s110 = sphi 0, %s109
      %s124 = sphi 0, %s110
      %s128 = sphi 0, %s128
      %s130 = sphi 0, %s128
      %s131 = sphi 0, %s130
      %s145 = sphi 0, %s131
      %s149 = sphi 0, %s149
      %s151 = sphi 0, %s149
      %s152 = sphi 0, %s151
      %s166 = sphi 0, %s152
      %s174 = sphi 0, %s176
      %s177 = sphi 0, %s174
      %s178 = sphi 0, %s177
      %s194 = sphi 0, %s178
    $region4: #{tpu_custom_call.1} parent=1 // loop_header_branch
      %22 = sbr.rel (%p20) target = $region8
    $region5: #{tpu_custom_call.1} parent=1 // loop_body
      %s24 = ssub.s32 %s19, 1
      %s25 = ssub.s32 %s19, 2
      %s32 = sadd.s32 1, %s27
      %p33 = scmp.ge.s32.totalorder %s32, 2
      %s34 = scalar_select %p33, 0, %s32
      %s35 = sadd.s32 1, %s26
      %s36 = scalar_select %p33, %s35, %s26
      %p37 = scmp.ge.s32.totalorder %s36, 2
      %s38 = scalar_select %p37, 0, %s36
      %s39 = ssub.s32 %s26, %s38
      %p40 = scmp.eq.s32.totalorder %s39, 0
      %s42 = sadd.s32 %s41, 1
      %s43 = scalar_select %p40, %s41, %s42
      %p46 = pneg %p40
      %p47 = scmp.eq.s32.totalorder %s19, 3
      %p48 = por %p46, %p47
      %p49 = scmp.ne.s32.totalorder %s41, %s44
      %p50 = scmp.eq.s32.totalorder %s19, 0
      %p51 = por %p49, %p50
      %p52 = scmp.ne.s32.totalorder %s41, %s44
      %p53 = scmp.eq.s32.totalorder %s24, 3
      %p54 = por %p52, %p53
      %p55 = scmp.ne.s32.totalorder %s44, %s45
      %p56 = scmp.eq.s32.totalorder %s24, 0
      %p57 = por %p55, %p56
      %p58 = scmp.ne.s32.totalorder %s44, %s45
      %p59 = scmp.eq.s32.totalorder %s25, 3
      %p60 = por %p58, %p59
      %p62 = scmp.ne.s32.totalorder %s45, %s61
      %p63 = scmp.eq.s32.totalorder %s25, 0
      %p64 = por %p62, %p63
      %s66 = sadd.s32 %s65, 1
      %p69 = scmp.eq.s32.totalorder %s19, 3
      %p70 = scmp.ne.s32.totalorder %s65, %s67
      %p71 = scmp.eq.s32.totalorder %s19, 0
      %p72 = por %p70, %p71
      %p73 = scmp.ne.s32.totalorder %s65, %s67
      %p74 = scmp.eq.s32.totalorder %s24, 3
      %p75 = por %p73, %p74
      %p76 = scmp.ne.s32.totalorder %s67, %s68
      %p77 = scmp.eq.s32.totalorder %s24, 0
      %p78 = por %p76, %p77
      %p79 = scmp.ne.s32.totalorder %s67, %s68
      %p80 = scmp.eq.s32.totalorder %s25, 3
      %p81 = por %p79, %p80
      %p83 = scmp.ne.s32.totalorder %s68, %s82
      %p84 = scmp.eq.s32.totalorder %s25, 0
      %p85 = por %p83, %p84
      %s87 = sadd.s32 %s86, 1
      %p90 = scmp.eq.s32.totalorder %s19, 3
      %p91 = scmp.ne.s32.totalorder %s86, %s88
      %p92 = scmp.eq.s32.totalorder %s19, 0
      %p93 = por %p91, %p92
      %p94 = scmp.ne.s32.totalorder %s86, %s88
      %p95 = scmp.eq.s32.totalorder %s24, 3
      %p96 = por %p94, %p95
      %p97 = scmp.ne.s32.totalorder %s88, %s89
      %p98 = scmp.eq.s32.totalorder %s24, 0
      %p99 = por %p97, %p98
      %p100 = scmp.ne.s32.totalorder %s88, %s89
      %p101 = scmp.eq.s32.totalorder %s25, 3
      %p102 = por %p100, %p101
      %p104 = scmp.ne.s32.totalorder %s89, %s103
      %p105 = scmp.eq.s32.totalorder %s25, 0
      %p106 = por %p104, %p105
      %s108 = sadd.s32 %s107, 1
      %p111 = scmp.eq.s32.totalorder %s19, 3
      %p112 = scmp.ne.s32.totalorder %s107, %s109
      %p113 = scmp.eq.s32.totalorder %s19, 0
      %p114 = por %p112, %p113
      %p115 = scmp.ne.s32.totalorder %s107, %s109
      %p116 = scmp.eq.s32.totalorder %s24, 3
      %p117 = por %p115, %p116
      %p118 = scmp.ne.s32.totalorder %s109, %s110
      %p119 = scmp.eq.s32.totalorder %s24, 0
      %p120 = por %p118, %p119
      %p121 = scmp.ne.s32.totalorder %s109, %s110
      %p122 = scmp.eq.s32.totalorder %s25, 3
      %p123 = por %p121, %p122
      %p125 = scmp.ne.s32.totalorder %s110, %s124
      %p126 = scmp.eq.s32.totalorder %s25, 0
      %p127 = por %p125, %p126
      %s129 = sadd.s32 %s128, 1
      %p132 = scmp.eq.s32.totalorder %s19, 3
      %p133 = scmp.ne.s32.totalorder %s128, %s130
      %p134 = scmp.eq.s32.totalorder %s19, 0
      %p135 = por %p133, %p134
      %p136 = scmp.ne.s32.totalorder %s128, %s130
      %p137 = scmp.eq.s32.totalorder %s24, 3
      %p138 = por %p136, %p137
      %p139 = scmp.ne.s32.totalorder %s130, %s131
      %p140 = scmp.eq.s32.totalorder %s24, 0
      %p141 = por %p139, %p140
      %p142 = scmp.ne.s32.totalorder %s130, %s131
      %p143 = scmp.eq.s32.totalorder %s25, 3
      %p144 = por %p142, %p143
      %p146 = scmp.ne.s32.totalorder %s131, %s145
      %p147 = scmp.eq.s32.totalorder %s25, 0
      %p148 = por %p146, %p147
      %s150 = sadd.s32 %s149, 1
      %p153 = scmp.eq.s32.totalorder %s19, 3
      %p154 = scmp.ne.s32.totalorder %s149, %s151
      %p155 = scmp.eq.s32.totalorder %s19, 0
      %p156 = por %p154, %p155
      %p157 = scmp.ne.s32.totalorder %s149, %s151
      %p158 = scmp.eq.s32.totalorder %s24, 3
      %p159 = por %p157, %p158
      %p160 = scmp.ne.s32.totalorder %s151, %s152
      %p161 = scmp.eq.s32.totalorder %s24, 0
      %p162 = por %p160, %p161
      %p163 = scmp.ne.s32.totalorder %s151, %s152
      %p164 = scmp.eq.s32.totalorder %s25, 3
      %p165 = por %p163, %p164
      %p167 = scmp.ne.s32.totalorder %s152, %s166
      %p168 = scmp.eq.s32.totalorder %s25, 0
      %p169 = por %p167, %p168
      %s170 = ssub.s32 %s26, %s38
      %s171 = ssub.s32 %s27, %s34
      %s172 = sor.u32 %s170, %s171
      %p173 = scmp.eq.s32.totalorder %s172, 0
      %s175 = sadd.s32 %s174, 1
      %s176 = scalar_select %p173, %s174, %s175
      %p179 = pneg %p173
      %p180 = scmp.eq.s32.totalorder %s19, 3
      %p181 = por %p179, %p180
      %p182 = scmp.ne.s32.totalorder %s174, %s177
      %p183 = scmp.eq.s32.totalorder %s19, 0
      %p184 = por %p182, %p183
      %p185 = scmp.ne.s32.totalorder %s174, %s177
      %p186 = scmp.eq.s32.totalorder %s24, 3
      %p187 = por %p185, %p186
      %p188 = scmp.ne.s32.totalorder %s177, %s178
      %p189 = scmp.eq.s32.totalorder %s24, 0
      %p190 = por %p188, %p189
      %p191 = scmp.ne.s32.totalorder %s177, %s178
      %p192 = scmp.eq.s32.totalorder %s25, 3
      %p193 = por %p191, %p192
      %p195 = scmp.ne.s32.totalorder %s178, %s194
      %p196 = scmp.eq.s32.totalorder %s25, 0
      %p197 = por %p195, %p196
      %p198 = scmp.le.s32.totalorder 1, %s19
      %p199 = scmp.lt.s32.totalorder %s19, 5
      %p200 = pnand %p198, %p199
      %p201 = pneg %p200
      // Predicated region
      $region9: #{tpu_custom_call.1} parent=5 // pred_check
        _
      $region10: #{tpu_custom_call.1} parent=5 // pred_check_branch
        %203 = sbr.rel (%p200) target = $region12
      $region11: #{tpu_custom_call.1} parent=5 // pred_region
        %s204 = ssub.s32 %s19, 1
        // Predicated region
        $region13: #{tpu_custom_call.1} parent=11 // pred_check
          %p205 = pneg %p78
        $region14: #{tpu_custom_call.1} parent=11 // pred_check_branch
          %207 = sbr.rel (%p205) target = $region16
        $region15: #{tpu_custom_call.1} parent=11 // pred_region
          %s209 = ssub.s32 512, 512
          %210 = vsyncadd [#allocation6], %s209
          %s211 = sshll.u32 [#allocation5], 4
          %s212 = int_to_ptr.vmem [resolvable:$true] %s211
          %217 = dma.hbm_to_vmem [thread:$0]  %s1, 512, %s212, [#allocation6], 128, 128, 8
        $region16: #{tpu_custom_call.1} parent=11 // pred_fallthru
          _
        // Predicated region
        $region17: #{tpu_custom_call.1} parent=11 // pred_check
          %p218 = pneg %p99
        $region18: #{tpu_custom_call.1} parent=11 // pred_check_branch
          %220 = sbr.rel (%p218) target = $region20
        $region19: #{tpu_custom_call.1} parent=11 // pred_region
          _
        $region20: #{tpu_custom_call.1} parent=11 // pred_fallthru
          _
        // Predicated region
        $region21: #{tpu_custom_call.1} parent=11 // pred_check
          %p221 = pneg %p120
        $region22: #{tpu_custom_call.1} parent=11 // pred_check_branch
          %223 = sbr.rel (%p221) target = $region24
        $region23: #{tpu_custom_call.1} parent=11 // pred_region
          _
        $region24: #{tpu_custom_call.1} parent=11 // pred_fallthru
          _
        // Predicated region
        $region25: #{tpu_custom_call.1} parent=11 // pred_check
          %p224 = pneg %p141
        $region26: #{tpu_custom_call.1} parent=11 // pred_check_branch
          %226 = sbr.rel (%p224) target = $region28
        $region27: #{tpu_custom_call.1} parent=11 // pred_region
          _
        $region28: #{tpu_custom_call.1} parent=11 // pred_fallthru
          _
        // Predicated region
        $region29: #{tpu_custom_call.1} parent=11 // pred_check
          %p227 = pneg %p162
        $region30: #{tpu_custom_call.1} parent=11 // pred_check_branch
          %229 = sbr.rel (%p227) target = $region32
        $region31: #{tpu_custom_call.1} parent=11 // pred_region
          _
        $region32: #{tpu_custom_call.1} parent=11 // pred_fallthru
          _
      $region12: #{tpu_custom_call.1} parent=5 // pred_fallthru
        _
      %p230 = scmp.lt.s32.totalorder %s19, 4
      // Predicated region
      $region33: #{tpu_custom_call.1} parent=5 // pred_check
        %p231 = pneg %p230
      $region34: #{tpu_custom_call.1} parent=5 // pred_check_branch
        %233 = sbr.rel (%p231) target = $region36
      $region35: #{tpu_custom_call.1} parent=5 // pred_region
        // Predicated region
        $region37: #{tpu_custom_call.1} parent=35 // pred_check
          %p234 = pneg %p51
        $region38: #{tpu_custom_call.1} parent=35 // pred_check_branch
          %236 = sbr.rel (%p234) target = $region40
        $region39: #{tpu_custom_call.1} parent=35 // pred_region
          %s237 = sand.u32 %s41, 1
          %s238 = scalar_lea.sflag [#allocation3], %s237
          %s239 = sand.u32 %s41, 1
          %s240 = smul.addr %s239, 16
          %s241 = scalar_lea.vmem [#allocation2], %s240
          %s243 = ssub.s32 256, 256
          %244 = vsyncadd %s238, %s243
          %s245 = smul.addr %s26, 2
          %s246 = smul.addr %s245, 128
          %s247 = scalar_lea.hbm %s0, %s246
          %s248 = sshll.u32 %s241, 4
          %s249 = int_to_ptr.vmem [resolvable:$true] %s248
          %254 = dma.hbm_to_vmem [thread:$0]  %s247, 256, %s249, %s238, 128, 128, 8
        $region40: #{tpu_custom_call.1} parent=35 // pred_fallthru
          _
      $region36: #{tpu_custom_call.1} parent=5 // pred_fallthru
        _
      %p255 = scmp.le.s32.totalorder 1, %s19
      %p256 = scmp.lt.s32.totalorder %s19, 5
      %p257 = pnand %p255, %p256
      %p258 = pneg %p257
      // Predicated region
      $region41: #{tpu_custom_call.1} parent=5 // pred_check
        _
      $region42: #{tpu_custom_call.1} parent=5 // pred_check_branch
        %260 = sbr.rel (%p257) target = $region44
      $region43: #{tpu_custom_call.1} parent=5 // pred_region
        %s261 = ssub.s32 %s19, 1
        %s262 = sand.u32 %s44, 1
        %s263 = scalar_lea.sflag [#allocation3], %s262
        %s264 = sand.u32 %s44, 1
        %s265 = smul.addr %s264, 16
        %s266 = scalar_lea.vmem [#allocation2], %s265
        // Predicated region
        $region45: #{tpu_custom_call.1} parent=43 // pred_check
          %p267 = pneg %p57
        $region46: #{tpu_custom_call.1} parent=43 // pred_check_branch
          %269 = sbr.rel (%p267) target = $region48
        $region47: #{tpu_custom_call.1} parent=43 // pred_region
          %270 = dma.done %s263, 256
        $region48: #{tpu_custom_call.1} parent=43 // pred_fallthru
          _
        // Predicated region
        $region49: #{tpu_custom_call.1} parent=43 // pred_check
          %p271 = pneg %p78
        $region50: #{tpu_custom_call.1} parent=43 // pred_check_branch
          %273 = sbr.rel (%p271) target = $region52
        $region51: #{tpu_custom_call.1} parent=43 // pred_region
          %274 = dma.done [#allocation6], 512
        $region52: #{tpu_custom_call.1} parent=43 // pred_fallthru
          _
        %s275 = sand.u32 %s44, 1
        %s276 = scalar_lea.sflag [#allocation3], %s275
        %s277 = sand.u32 %s44, 1
        %s278 = smul.addr %s277, 16
        %s279 = scalar_lea.vmem [#allocation2], %s278
        %p280 = pneg %p57
        %p281 = pneg %p54
        %p282 = pneg %p78
        %p283 = pneg %p75
        %p284 = pneg %p99
        %p285 = pneg %p96
        %p286 = pneg %p120
        %p287 = pneg %p117
        %p288 = pneg %p141
        %p289 = pneg %p138
        %p290 = pneg %p162
        %p291 = pneg %p159
        %p292 = pneg %p190
        %p293 = pneg %p187
        %s294 = sand.u32 %s177, 1
        %s295 = scalar_lea.sflag [#allocation4], %s294
        %s296 = sand.u32 %s177, 1
        %s297 = smul.addr %s296, 8
        %s298 = scalar_lea.vmem [#allocation7], %s297
        %s299 = smul.u32 %s29, 8
        %s300 = scalar_lea.vmem %s266, %s299 [#allocation2]
        %v301 = vld [vmem:[%s300] sm:$0xff]
        %s302 = ssub.s32 %s299, 2
        %p303 = scmp.gt.s32.totalorder %s302, 0
        %s304 = scalar_select %p303, %s302, 0
        %s305 = scalar_lea.vmem %s266, %s304 [#allocation2]
        %v306 = vld [vmem:[%s305] sm:$0x3]
        %s307 = sadd.s32 %s299, 8
        %p308 = scmp.lt.s32.totalorder %s307, 14
        %s309 = scalar_select %p308, %s307, 14
        %s310 = scalar_lea.vmem %s266, %s309 [#allocation2]
        %v311 = vld [vmem:[%s310] sm:$0x3]
        %p312 = scmp.gt.s32.totalorder %s29, 0
        %s313 = scalar_select %p312, 1, 0
        %v314 = vstv %s313
        %vm315 = vcmp.eq.s32.totalorder %v314, 1
        %v316 = vsel %vm315, %v306, 0.0
        %p317 = scmp.lt.s32.totalorder %s29, 1
        %s318 = scalar_select %p317, 1, 0
        %v319 = vstv %s318
        %vm320 = vcmp.eq.s32.totalorder %v319, 1
        %v321 = vsel %vm320, %v311, 0.0
        %v323 = vrot.slane %v301, 6
        %v326 = vrot.slane %v321, 6
        %vm328 = vcmask 1041408
        %v329 = vsel %vm328, %v316, %v323
        %v330 = vsel %vm328, %v323, %v326
        %333 = vrot.lane.b32.xlu0 %v329, 66
        %v334 = vpop.permute.xlu0 %333
        %335 = vrot.lane.b32.xlu0 %v330, 66
        %v336 = vpop.permute.xlu0 %335
        %339 = vrot.lane.b32.xlu0 %v329, 2
        %v340 = vpop.permute.xlu0 %339
        %341 = vrot.lane.b32.xlu0 %v330, 2
        %v342 = vpop.permute.xlu0 %341
        %vm345 = vcmask 15360
        %v346 = vsel %vm345, %v334, %v340
        %v347 = vsel %vm345, %v336, %v342
        %348 = vrot.lane.b32.xlu0 %v329, 65
        %v349 = vpop.permute.xlu0 %348
        %350 = vrot.lane.b32.xlu0 %v330, 65
        %v351 = vpop.permute.xlu0 %350
        %354 = vrot.lane.b32.xlu0 %v329, 1
        %v355 = vpop.permute.xlu0 %354
        %356 = vrot.lane.b32.xlu0 %v330, 1
        %v357 = vpop.permute.xlu0 %356
        %vm360 = vcmask 7168
        %v361 = vsel %vm360, %v349, %v355
        %v362 = vsel %vm360, %v351, %v357
        %363 = vrot.lane.b32.xlu0 %v329, 127
        %v364 = vpop.permute.xlu0 %363
        %365 = vrot.lane.b32.xlu0 %v330, 127
        %v366 = vpop.permute.xlu0 %365
        %369 = vrot.lane.b32.xlu0 %v329, 63
        %v370 = vpop.permute.xlu0 %369
        %371 = vrot.lane.b32.xlu0 %v330, 63
        %v372 = vpop.permute.xlu0 %371
        %vm375 = vcmask 515072
        %v376 = vsel %vm375, %v364, %v370
        %v377 = vsel %vm375, %v366, %v372
        %378 = vrot.lane.b32.xlu0 %v329, 126
        %v379 = vpop.permute.xlu0 %378
        %380 = vrot.lane.b32.xlu0 %v330, 126
        %v381 = vpop.permute.xlu0 %380
        %384 = vrot.lane.b32.xlu0 %v329, 62
        %v385 = vpop.permute.xlu0 %384
        %386 = vrot.lane.b32.xlu0 %v330, 62
        %v387 = vpop.permute.xlu0 %386
        %vm390 = vcmask 506880
        %v391 = vsel %vm390, %v379, %v385
        %v392 = vsel %vm390, %v381, %v387
        %v393 = vld [vmem:[#allocation5] sm:$0xff]
        %v394 = vld [vmem:[#allocation5 + $0x8] sm:$0xff]
        %v395 = vld [vmem:[#allocation5 + $0x10] sm:$0xff]
        %v396 = vld [vmem:[#allocation5 + $0x18] sm:$0x1]
        %v397 = vlaneseq
        %v398 = vshrl.u32 %v397, 7
        %v399 = vsub.s32 0, %v398
        %v400 = vrot.slane %v393, %v399
        %v401 = vmul.f32 %v346, %v400
        %v402 = vld [vmem:[%s2] sm:$0x1]
        %v404 = vlaneseq
        %v405 = vshrl.u32 %v404, 7
        %v406 = vsub.s32 0, %v405
        %v407 = vrot.slane %v402, %v406
        %v409 = vadd.f32 %v401, %v407
        %v410 = vlaneseq
        %v411 = vshrl.u32 %v410, 7
        %v412 = vsub.s32 1, %v411
        %v413 = vrot.slane %v393, %v412
        %v414 = vmul.f32 %v361, %v413
        %v415 = vadd.f32 %v409, %v414
        %v416 = vlaneseq
        %v417 = vshrl.u32 %v416, 7
        %v418 = vsub.s32 2, %v417
        %v419 = vrot.slane %v393, %v418
        %v420 = vmul.f32 %v329, %v419
        %v421 = vadd.f32 %v415, %v420
        %v422 = vlaneseq
        %v423 = vshrl.u32 %v422, 7
        %v424 = vsub.s32 3, %v423
        %v425 = vrot.slane %v393, %v424
        %v426 = vmul.f32 %v376, %v425
        %v427 = vadd.f32 %v421, %v426
        %v428 = vlaneseq
        %v429 = vshrl.u32 %v428, 7
        %v430 = vsub.s32 4, %v429
        %v431 = vrot.slane %v393, %v430
        %v432 = vmul.f32 %v391, %v431
        %v433 = vadd.f32 %v427, %v432
        %v434 = vlaneseq
        %v435 = vshrl.u32 %v434, 7
        %v436 = vsub.s32 5, %v435
        %v437 = vrot.slane %v393, %v436
        %v438 = vmul.f32 %v346, %v437
        %v439 = vmul.f32 %v347, %v437
        %vm442 = vcmask 1046528
        %v443 = vrot.slane %v438, 1
        %v444 = vrot.slane %v439, 1
        %v445 = vsel %vm442, %v443, %v444
        %v447 = vadd.f32 %v433, %v445
        %v448 = vlaneseq
        %v449 = vshrl.u32 %v448, 7
        %v450 = vsub.s32 6, %v449
        %v451 = vrot.slane %v393, %v450
        %v452 = vmul.f32 %v361, %v451
        %v453 = vmul.f32 %v362, %v451
        %v456 = vrot.slane %v452, 1
        %v457 = vrot.slane %v453, 1
        %v458 = vsel %vm442, %v456, %v457
        %v460 = vadd.f32 %v447, %v458
        %v461 = vlaneseq
        %v462 = vshrl.u32 %v461, 7
        %v463 = vsub.s32 7, %v462
        %v464 = vrot.slane %v393, %v463
        %v465 = vmul.f32 %v329, %v464
        %v466 = vmul.f32 %v330, %v464
        %v469 = vrot.slane %v465, 1
        %v470 = vrot.slane %v466, 1
        %v471 = vsel %vm442, %v469, %v470
        %v473 = vadd.f32 %v460, %v471
        %v474 = vlaneseq
        %v475 = vshrl.u32 %v474, 7
        %v476 = vsub.s32 0, %v475
        %v477 = vrot.slane %v394, %v476
        %v478 = vmul.f32 %v376, %v477
        %v479 = vmul.f32 %v377, %v477
        %v482 = vrot.slane %v478, 1
        %v483 = vrot.slane %v479, 1
        %v484 = vsel %vm442, %v482, %v483
        %v486 = vadd.f32 %v473, %v484
        %v487 = vlaneseq
        %v488 = vshrl.u32 %v487, 7
        %v489 = vsub.s32 1, %v488
        %v490 = vrot.slane %v394, %v489
        %v491 = vmul.f32 %v391, %v490
        %v492 = vmul.f32 %v392, %v490
        %v495 = vrot.slane %v491, 1
        %v496 = vrot.slane %v492, 1
        %v497 = vsel %vm442, %v495, %v496
        %v499 = vadd.f32 %v486, %v497
        %v500 = vlaneseq
        %v501 = vshrl.u32 %v500, 7
        %v502 = vsub.s32 2, %v501
        %v503 = vrot.slane %v394, %v502
        %v504 = vmul.f32 %v346, %v503
        %v505 = vmul.f32 %v347, %v503
        %vm508 = vcmask 1045504
        %v509 = vrot.slane %v504, 2
        %v510 = vrot.slane %v505, 2
        %v511 = vsel %vm508, %v509, %v510
        %v513 = vadd.f32 %v499, %v511
        %v514 = vlaneseq
        %v515 = vshrl.u32 %v514, 7
        %v516 = vsub.s32 3, %v515
        %v517 = vrot.slane %v394, %v516
        %v518 = vmul.f32 %v361, %v517
        %v519 = vmul.f32 %v362, %v517
        %v522 = vrot.slane %v518, 2
        %v523 = vrot.slane %v519, 2
        %v524 = vsel %vm508, %v522, %v523
        %v526 = vadd.f32 %v513, %v524
        %v527 = vlaneseq
        %v528 = vshrl.u32 %v527, 7
        %v529 = vsub.s32 4, %v528
        %v530 = vrot.slane %v394, %v529
        %v531 = vmul.f32 %v329, %v530
        %v532 = vmul.f32 %v330, %v530
        %v535 = vrot.slane %v531, 2
        %v536 = vrot.slane %v532, 2
        %v537 = vsel %vm508, %v535, %v536
        %v539 = vadd.f32 %v526, %v537
        %v540 = vlaneseq
        %v541 = vshrl.u32 %v540, 7
        %v542 = vsub.s32 5, %v541
        %v543 = vrot.slane %v394, %v542
        %v544 = vmul.f32 %v376, %v543
        %v545 = vmul.f32 %v377, %v543
        %v548 = vrot.slane %v544, 2
        %v549 = vrot.slane %v545, 2
        %v550 = vsel %vm508, %v548, %v549
        %v552 = vadd.f32 %v539, %v550
        %v553 = vlaneseq
        %v554 = vshrl.u32 %v553, 7
        %v555 = vsub.s32 6, %v554
        %v556 = vrot.slane %v394, %v555
        %v557 = vmul.f32 %v391, %v556
        %v558 = vmul.f32 %v392, %v556
        %v561 = vrot.slane %v557, 2
        %v562 = vrot.slane %v558, 2
        %v563 = vsel %vm508, %v561, %v562
        %v565 = vadd.f32 %v552, %v563
        %v566 = vlaneseq
        %v567 = vshrl.u32 %v566, 7
        %v568 = vsub.s32 7, %v567
        %v569 = vrot.slane %v394, %v568
        %v570 = vmul.f32 %v346, %v569
        %v571 = vmul.f32 %v347, %v569
        %vm574 = vcmask 1044480
        %v575 = vrot.slane %v570, 3
        %v576 = vrot.slane %v571, 3
        %v577 = vsel %vm574, %v575, %v576
        %v579 = vadd.f32 %v565, %v577
        %v580 = vlaneseq
        %v581 = vshrl.u32 %v580, 7
        %v582 = vsub.s32 0, %v581
        %v583 = vrot.slane %v395, %v582
        %v584 = vmul.f32 %v361, %v583
        %v585 = vmul.f32 %v362, %v583
        %v588 = vrot.slane %v584, 3
        %v589 = vrot.slane %v585, 3
        %v590 = vsel %vm574, %v588, %v589
        %v592 = vadd.f32 %v579, %v590
        %v593 = vlaneseq
        %v594 = vshrl.u32 %v593, 7
        %v595 = vsub.s32 1, %v594
        %v596 = vrot.slane %v395, %v595
        %v597 = vmul.f32 %v329, %v596
        %v598 = vmul.f32 %v330, %v596
        %v601 = vrot.slane %v597, 3
        %v602 = vrot.slane %v598, 3
        %v603 = vsel %vm574, %v601, %v602
        %v605 = vadd.f32 %v592, %v603
        %v606 = vlaneseq
        %v607 = vshrl.u32 %v606, 7
        %v608 = vsub.s32 2, %v607
        %v609 = vrot.slane %v395, %v608
        %v610 = vmul.f32 %v376, %v609
        %v611 = vmul.f32 %v377, %v609
        %v614 = vrot.slane %v610, 3
        %v615 = vrot.slane %v611, 3
        %v616 = vsel %vm574, %v614, %v615
        %v618 = vadd.f32 %v605, %v616
        %v619 = vlaneseq
        %v620 = vshrl.u32 %v619, 7
        %v621 = vsub.s32 3, %v620
        %v622 = vrot.slane %v395, %v621
        %v623 = vmul.f32 %v391, %v622
        %v624 = vmul.f32 %v392, %v622
        %v627 = vrot.slane %v623, 3
        %v628 = vrot.slane %v624, 3
        %v629 = vsel %vm574, %v627, %v628
        %v631 = vadd.f32 %v618, %v629
        %v632 = vlaneseq
        %v633 = vshrl.u32 %v632, 7
        %v634 = vsub.s32 4, %v633
        %v635 = vrot.slane %v395, %v634
        %v636 = vmul.f32 %v346, %v635
        %v637 = vmul.f32 %v347, %v635
        %vm640 = vcmask 1043456
        %v641 = vrot.slane %v636, 4
        %v642 = vrot.slane %v637, 4
        %v643 = vsel %vm640, %v641, %v642
        %v645 = vadd.f32 %v631, %v643
        %v646 = vlaneseq
        %v647 = vshrl.u32 %v646, 7
        %v648 = vsub.s32 5, %v647
        %v649 = vrot.slane %v395, %v648
        %v650 = vmul.f32 %v361, %v649
        %v651 = vmul.f32 %v362, %v649
        %v654 = vrot.slane %v650, 4
        %v655 = vrot.slane %v651, 4
        %v656 = vsel %vm640, %v654, %v655
        %v658 = vadd.f32 %v645, %v656
        %v659 = vlaneseq
        %v660 = vshrl.u32 %v659, 7
        %v661 = vsub.s32 6, %v660
        %v662 = vrot.slane %v395, %v661
        %v663 = vmul.f32 %v329, %v662
        %v664 = vmul.f32 %v330, %v662
        %v667 = vrot.slane %v663, 4
        %v668 = vrot.slane %v664, 4
        %v669 = vsel %vm640, %v667, %v668
        %v671 = vadd.f32 %v658, %v669
        %v672 = vlaneseq
        %v673 = vshrl.u32 %v672, 7
        %v674 = vsub.s32 7, %v673
        %v675 = vrot.slane %v395, %v674
        %v676 = vmul.f32 %v376, %v675
        %v677 = vmul.f32 %v377, %v675
        %v680 = vrot.slane %v676, 4
        %v681 = vrot.slane %v677, 4
        %v682 = vsel %vm640, %v680, %v681
        %v684 = vadd.f32 %v671, %v682
        %v685 = vlaneseq
        %v686 = vshrl.u32 %v685, 7
        %v687 = vsub.s32 0, %v686
        %v688 = vrot.slane %v396, %v687
        %v689 = vmul.f32 %v391, %v688
        %v690 = vmul.f32 %v392, %v688
        %v693 = vrot.slane %v689, 4
        %v694 = vrot.slane %v690, 4
        %v695 = vsel %vm640, %v693, %v694
        %v697 = vadd.f32 %v684, %v695
        %vm698 = vcmask 523264
        %v699 = vsel %vm698, %v301, 0.0
        %v700 = vld [vmem:[%s3] sm:$0xf]
        %v701 = vld [vmem:[%s4] sm:$0x1]
        %v703 = vlaneseq
        %v704 = vshrl.u32 %v703, 7
        %v705 = vsub.s32 0, %v704
        %v706 = vrot.slane %v701, %v705
        %v708 = vadd.f32 %v699, %v706
        %710 = vrot.lane.b32.xlu0 %v697, 16
        %v711 = vpop.permute.xlu0 %710
        %713 = vrot.lane.b32.xlu0 %v697, 32
        %v714 = vpop.permute.xlu0 %713
        %716 = vrot.lane.b32.xlu0 %v697, 48
        %v717 = vpop.permute.xlu0 %716
        %719 = vrot.lane.b32.xlu0 %v697, 64
        %v720 = vpop.permute.xlu0 %719
        %722 = vrot.lane.b32.xlu0 %v697, 80
        %v723 = vpop.permute.xlu0 %722
        %725 = vrot.lane.b32.xlu0 %v697, 96
        %v726 = vpop.permute.xlu0 %725
        %728 = vrot.lane.b32.xlu0 %v697, 112
        %v729 = vpop.permute.xlu0 %728
        %vm731 = vcmask 130048
        %v732 = vsel %vm731, %v697, %v711
        %vm733 = vcmask 261120
        %v734 = vsel %vm733, %v732, %v714
        %vm735 = vcmask 392192
        %v736 = vsel %vm735, %v734, %v717
        %v737 = vsel %vm698, %v736, %v720
        %vm738 = vcmask 654336
        %v739 = vsel %vm738, %v737, %v723
        %vm740 = vcmask 785408
        %v741 = vsel %vm740, %v739, %v726
        %vm742 = vcmask 916480
        %v743 = vsel %vm742, %v741, %v729
        %v744 = vlaneseq
        %v745 = vshrl.u32 %v744, 7
        %v746 = vsub.s32 0, %v745
        %v747 = vrot.slane %v700, %v746
        %v748 = vmul.f32 %v743, %v747
        %v749 = vadd.f32 %v708, %v748
        %v750 = vsel %vm731, %v729, %v697
        %v751 = vsel %vm733, %v750, %v711
        %v752 = vsel %vm735, %v751, %v714
        %v753 = vsel %vm698, %v752, %v717
        %v754 = vsel %vm738, %v753, %v720
        %v755 = vsel %vm740, %v754, %v723
        %v756 = vsel %vm742, %v755, %v726
        %v757 = vlaneseq
        %v758 = vshrl.u32 %v757, 7
        %v759 = vsub.s32 1, %v758
        %v760 = vrot.slane %v700, %v759
        %v761 = vmul.f32 %v756, %v760
        %v762 = vadd.f32 %v749, %v761
        %v763 = vsel %vm731, %v726, %v729
        %v764 = vsel %vm733, %v763, %v697
        %v765 = vsel %vm735, %v764, %v711
        %v766 = vsel %vm698, %v765, %v714
        %v767 = vsel %vm738, %v766, %v717
        %v768 = vsel %vm740, %v767, %v720
        %v769 = vsel %vm742, %v768, %v723
        %v770 = vlaneseq
        %v771 = vshrl.u32 %v770, 7
        %v772 = vsub.s32 2, %v771
        %v773 = vrot.slane %v700, %v772
        %v774 = vmul.f32 %v769, %v773
        %v775 = vadd.f32 %v762, %v774
        %v776 = vsel %vm731, %v723, %v726
        %v777 = vsel %vm733, %v776, %v729
        %v778 = vsel %vm735, %v777, %v697
        %v779 = vsel %vm698, %v778, %v711
        %v780 = vsel %vm738, %v779, %v714
        %v781 = vsel %vm740, %v780, %v717
        %v782 = vsel %vm742, %v781, %v720
        %v783 = vlaneseq
        %v784 = vshrl.u32 %v783, 7
        %v785 = vsub.s32 3, %v784
        %v786 = vrot.slane %v700, %v785
        %v787 = vmul.f32 %v782, %v786
        %v788 = vadd.f32 %v775, %v787
        %vm789 = vcmp.ge.f32.partialorder %v788, 0.0
        %v790 = vld [vmem:[%s5] sm:$0x1]
        %v792 = vlaneseq
        %v793 = vshrl.u32 %v792, 7
        %v794 = vsub.s32 0, %v793
        %v795 = vrot.slane %v790, %v794
        %v797 = vmul.f32 %v795, %v788
        %v798 = vsel %vm789, %v788, %v797
        %799 = vst [vmem:[%s298] sm:$0xff] %v798
        %s800 = sand.u32 %s177, 1
        %s801 = scalar_lea.sflag [#allocation4], %s800
        %s802 = sand.u32 %s177, 1
        %s803 = smul.addr %s802, 8
        %s804 = scalar_lea.vmem [#allocation7], %s803
        // Predicated region
        $region53: #{tpu_custom_call.1} parent=43 // pred_check
          %p805 = pneg %p187
        $region54: #{tpu_custom_call.1} parent=43 // pred_check_branch
          %807 = sbr.rel (%p805) target = $region56
        $region55: #{tpu_custom_call.1} parent=43 // pred_region
          %s809 = ssub.s32 128, 128
          %810 = vsyncadd %s801, %s809
          %s811 = smul.addr %s28, 2
          %s812 = sadd.s32 %s29, %s811
          %s813 = smul.addr %s812, 128
          %s814 = scalar_lea.hbm %s6, %s813
          %s816 = sshll.u32 %s804, 4
          %s817 = int_to_ptr.vmem [resolvable:$true] %s816
          %819 = dma.vmem_to_hbm [thread:$0]  %s817, 128, %s814, %s801
        $region56: #{tpu_custom_call.1} parent=43 // pred_fallthru
          _
      $region44: #{tpu_custom_call.1} parent=5 // pred_fallthru
        _
      %p820 = scmp.le.s32.totalorder 2, %s19
      // Predicated region
      $region57: #{tpu_custom_call.1} parent=5 // pred_check
        %p821 = pneg %p820
      $region58: #{tpu_custom_call.1} parent=5 // pred_check_branch
        %823 = sbr.rel (%p821) target = $region60
      $region59: #{tpu_custom_call.1} parent=5 // pred_region
        %s824 = ssub.s32 %s19, 2
        // Predicated region
        $region61: #{tpu_custom_call.1} parent=59 // pred_check
          %p825 = pneg %p193
        $region62: #{tpu_custom_call.1} parent=59 // pred_check_branch
          %827 = sbr.rel (%p825) target = $region64
        $region63: #{tpu_custom_call.1} parent=59 // pred_region
          %s828 = sand.u32 %s178, 1
          %s829 = scalar_lea.sflag [#allocation4], %s828
          %s830 = sand.u32 %s178, 1
          %s831 = smul.addr %s830, 8
          %s832 = scalar_lea.vmem [#allocation7], %s831
          %833 = dma.done %s829, 128
        $region64: #{tpu_custom_call.1} parent=59 // pred_fallthru
          _
      $region60: #{tpu_custom_call.1} parent=5 // pred_fallthru
        _
    $region6: #{tpu_custom_call.1} parent=1 // loop_footer
      %s23 = sadd.s32 1, %s19
    $region7: #{tpu_custom_call.1} parent=1 // loop_footer_branch
      %18 = sbr.rel target = $region3
    $region8: #{tpu_custom_call.1} parent=1 // loop_exit
      _
    %834 = vsyncpa [#allocation3], 1
    %s835 = scalar_lea.sflag [#allocation3], 1
    %836 = vsyncpa %s835, 1
    %837 = vsyncpa [#allocation6], 1
    %838 = vsyncpa [#allocation4], 1
    %s839 = scalar_lea.sflag [#allocation4], 1
    %840 = vsyncpa %s839, 1

</llo_original>
